<compile_context>
chip_gen: v5e
topology: v5e:2x2
jax: 0.10.0
libtpu: 0.0.40
codegen_flags: <defaults>
</compile_context>

<pallas_src>
import functools

import jax
import jax.numpy as jnp
from jax import lax
from jax.experimental import pallas as pl
from jax.experimental.pallas import tpu as pltpu


def _grad_free_full_loss_kernel(
    xnxu_ref, w_enc_ref, w_cat_ref, w_dec_x_ref, xi0_ref,
    pred_ref, ae_ref,
    *, n_x, n_xu, lib_row, batch, block_b):
  """One lane-dense batch tile; streamed rows are [x_next^T ; pad ; xu^T]."""
  i = pl.program_id(0)
  f32 = jnp.float32

  # Single up-cast of the streamed tile; every later use reads this f32 value.
  x_all = xnxu_ref[...].astype(f32)              # (n_feat, TB)
  xn_rows = x_all.shape[0] - n_xu                # sublane-aligned x_next block
  xn_cols = x_all[0:n_x, :]                      # (n_x, TB)   offset 0
  xu_cols = x_all[xn_rows:, :]                   # (n_xu, TB)  offset multiple of 8

  # Encoder: z = tanh(W_enc^T @ xu^T).  w_enc is zero-extended over the x_next
  # rows so the streamed tile feeds the MXU without a pre-slice.
  z = jnp.tanh(jnp.dot(w_enc_ref[...], x_all, preferred_element_type=f32))  # (n_z, TB)

  # Polynomial library RHS [z ; z**2]: 2*n_z rows (a full sublane tile).
  theta_rhs = jnp.concatenate([z, z * z], axis=0)                           # (2*n_z, TB)

  # One fused MXU call:
  #   rows [0, n_xu)               -> [x_dec^T ; u_dec^T]
  #   rows [lib_row, lib_row+n_z)  -> Xi_lin^T z + Xi_quad^T z**2
  fused = jnp.dot(w_cat_ref[...], theta_rhs, preferred_element_type=f32)    # (lib_row+n_z, TB)
  recon = fused[0:n_xu, :]                                                   # aligned prefix slice
  theta_xi = xi0_ref[...] + fused[lib_row:lib_row + fused.shape[0] - lib_row, :]

  # state_decoder(theta(z) Xi)
  x_pred = jnp.dot(w_dec_x_ref[...], theta_xi, preferred_element_type=f32)  # (n_x, TB)

  d_pred = x_pred - xn_cols
  d_ae = recon - xu_cols

  def _write(dp, da):
    pred_ref[...] = jnp.broadcast_to(jnp.sum(dp * dp, keepdims=True), pred_ref.shape)
    ae_ref[...] = jnp.broadcast_to(jnp.sum(da * da, keepdims=True), ae_ref.shape)

  tile_end = (i + 1) * block_b

  @pl.when(tile_end <= batch)
  def _full_tile():           # mask-free fast path (all columns valid)
    _write(d_pred, d_ae)

  @pl.when(tile_end > batch)
  def _ragged_tile():         # last tile: columns >= batch hold unspecified VMEM
    col = i * block_b + lax.broadcasted_iota(jnp.int32, (1, block_b), 1)
    valid = col < batch
    _write(jnp.where(valid, d_pred, 0.0), jnp.where(valid, d_ae, 0.0))


def grad_free_full_loss(xu, mu, x_next, params, lambda_0, lambda_1, lambda_2,
                        *, block_b=8192, stream_dtype=jnp.bfloat16):
  """Returns (total, loss_pred/numel(x_next), loss_AE/numel(xu), loss_reg/numel(Xi)).

  `mu` is accepted for signature parity with the PyTorch module but is unused
  by its forward pass.  bf16 HBM streaming is the default (halves streamed
  bytes); resident weights and all accumulation stay f32.
  """
  del mu  # unused by GradFreeFullLoss.forward in the reference implementation
  w_enc, w_dec_x, w_dec_u, xi = params
  f32 = jnp.float32

  B = xu.shape[0]
  n_x = x_next.shape[1]
  n_u = xu.shape[1] - n_x
  n_xu = n_x + n_u
  n_z = w_enc.shape[1]

  xn_rows = -(-n_x // 8) * 8          # x_next rows padded to a sublane tile
  n_feat = xn_rows + n_xu             # rows of the single streamed operand
  lib_row = -(-n_xu // 8) * 8         # sublane-aligned start of the Xi block

  # Batch tile (lane axis): multiple of 128, capped at 32K for v7x VMEM.
  block_b = max(128, min(int(block_b), 32768))
  block_b = (block_b // 128) * 128
  block_b = min(block_b, ((B + 127) // 128) * 128)
  num_tiles = pl.cdiv(B, block_b)

  # Single lane-dense streamed operand [x_next^T ; pad ; xu^T]; no batch pad —
  # the ragged tail is masked in-kernel.
  # TODO(synk): this transpose is still one extra HBM pass over the streamed
  # data; feed feature-major (n_feat, B) activations from upstream to drop it.
  if xn_rows == n_x:
    xnxu = jnp.concatenate([x_next, xu], axis=1)
  else:
    xnxu = jnp.concatenate(
        [x_next, jnp.zeros((B, xn_rows - n_x), x_next.dtype), xu], axis=1)
  xnxu_t = xnxu.T.astype(stream_dtype)                          # (n_feat, B)

  # Resident weights: always f32 (a few KB of VMEM; casting them to the stream
  # dtype saves no bandwidth and only adds VALU work + error).
  xi_f = xi.astype(f32)
  xi0 = xi_f[0:1, :].T                                          # (n_z, 1)
  xi1_t = xi_f[1:1 + n_z, :].T                                  # (n_z, n_z)
  xi2_t = xi_f[1 + n_z:, :].T                                   # (n_z, n_z)

  w_enc_ext = jnp.concatenate(
      [jnp.zeros((n_z, xn_rows), f32), w_enc.astype(f32).T], axis=1)  # (n_z, n_feat)

  dec_t = jnp.concatenate(
      [w_dec_x.astype(f32).T, w_dec_u.astype(f32).T], axis=0)   # (n_xu, n_z)
  w_cat = jnp.concatenate([
      jnp.concatenate([dec_t, jnp.zeros((n_xu, n_z), f32)], axis=1),  # decoder rows
      jnp.zeros((lib_row - n_xu, 2 * n_z), f32),                      # alignment pad
      jnp.concatenate([xi1_t, xi2_t], axis=1),                        # library rows
  ], axis=0)                                                    # (lib_row + n_z, 2*n_z)

  w_dec_x_t = w_dec_x.astype(f32).T                             # (n_x, n_z)

  kernel = functools.partial(
      _grad_free_full_loss_kernel,
      n_x=n_x, n_xu=n_xu, lib_row=lib_row, batch=B, block_b=block_b)

  grid_spec = pltpu.PrefetchScalarGridSpec(
      num_scalar_prefetch=0,
      grid=(num_tiles,),
      in_specs=[
          pl.BlockSpec((n_feat, block_b), lambda i: (0, i)),          # streamed tile
          pl.BlockSpec((n_z, n_feat), lambda i: (0, 0)),              # W_enc^T (resident)
          pl.BlockSpec((lib_row + n_z, 2 * n_z), lambda i: (0, 0)),   # fused dec+Xi (resident)
          pl.BlockSpec((n_x, n_z), lambda i: (0, 0)),                 # W_dec_x^T (resident)
          pl.BlockSpec((n_z, 1), lambda i: (0, 0)),                   # Xi constant term
      ],
      out_specs=[
          pl.BlockSpec((1, 128), lambda i: (0, i)),                   # per-tile pred partial
          pl.BlockSpec((1, 128), lambda i: (0, i)),                   # per-tile AE partial
      ],
  )

  pred_parts, ae_parts = pl.pallas_call(
      kernel,
      out_shape=(jax.ShapeDtypeStruct((1, num_tiles * 128), f32),
                 jax.ShapeDtypeStruct((1, num_tiles * 128), f32)),
      grid_spec=grid_spec,
      compiler_params=pltpu.CompilerParams(
          dimension_semantics=("parallel",),   # v7x: tiles split across both TCs
          vmem_limit_bytes=(64 if block_b > 8192 else 32) * 1024 * 1024),
  )(xnxu_t, w_enc_ext, w_cat, w_dec_x_t, xi0)

  loss_pred = jnp.sum(pred_parts.reshape(num_tiles, 128)[:, 0])
  loss_ae = jnp.sum(ae_parts.reshape(num_tiles, 128)[:, 0])

  # loss_reg = torch.linalg.matrix_norm(Xi, ord=1) = max column abs-sum.
  # Grid-invariant 9x4 reduction -> keep it in the wrapper (fused by XLA).
  loss_reg = jnp.max(jnp.sum(jnp.abs(xi_f), axis=0))

  total = (float(lambda_0) * loss_pred + float(lambda_1) * loss_ae
           + float(lambda_2) * loss_reg)
  return (total, loss_pred / x_next.size, loss_ae / xu.size,
          loss_reg / xi.size)


def _reference(xu, x_next, params, lambda_0, lambda_1, lambda_2):
  """Pure-JAX mirror of the PyTorch forward (for validation)."""
  w_enc, w_dec_x, w_dec_u, xi = params
  z = jnp.tanh(xu @ w_enc)
  x_dec = z @ w_dec_x
  u_dec = z @ w_dec_u
  theta_z = jnp.concatenate(
      [jnp.ones((z.shape[0], 1), jnp.float32), z, z * z], axis=1)
  theta_xi = theta_z @ xi
  x_pred = theta_xi @ w_dec_x
  loss_pred = jnp.sum((x_pred - x_next) ** 2)
  loss_ae = jnp.sum((jnp.concatenate([x_dec, u_dec], axis=1) - xu) ** 2)
  loss_reg = jnp.max(jnp.sum(jnp.abs(xi), axis=0))
  total = lambda_0 * loss_pred + lambda_1 * loss_ae + lambda_2 * loss_reg
  return (total, loss_pred / x_next.size, loss_ae / xu.size,
          loss_reg / xi.size)


if __name__ == "__main__":
  # Batch chosen so the small-tile run has several tiles AND a ragged remainder
  # (300 = 2*128 + 44) to exercise both the full-tile and masked-tail paths.
  B, n_x, n_u, n_z = 300, 8, 4, 4
  n_lib = 1 + 2 * n_z
  lambda_0, lambda_1, lambda_2 = 1.0, 0.1, 0.01

  key = jax.random.PRNGKey(0)
  k = jax.random.split(key, 7)
  xu = jax.random.normal(k[0], (B, n_x + n_u), jnp.float32)
  mu = jax.random.normal(k[1], (B, 2), jnp.float32)       # unused by forward
  x_next = jax.random.normal(k[2], (B, n_x), jnp.float32)
  w_enc = 0.3 * jax.random.normal(k[3], (n_x + n_u, n_z), jnp.float32)
  w_dec_x = 0.3 * jax.random.normal(k[4], (n_z, n_x), jnp.float32)
  w_dec_u = 0.3 * jax.random.normal(k[5], (n_z, n_u), jnp.float32)
  xi = 0.3 * jax.random.normal(k[6], (n_lib, n_z), jnp.float32)
  params = (w_enc, w_dec_x, w_dec_u, xi)

  ref = _reference(xu, x_next, params, lambda_0, lambda_1, lambda_2)

  # f32 streaming, small tile -> multi-tile grid with ragged tail: tight check.
  res_f32 = grad_free_full_loss(xu, mu, x_next, params, lambda_0, lambda_1,
                                lambda_2, block_b=128,
                                stream_dtype=jnp.float32)
  res_f32 = jax.block_until_ready(res_f32)
  for got, want in zip(res_f32, ref):
    assert jnp.allclose(got, want, rtol=2e-3, atol=2e-3), (got, want)

  # Default path: bf16 HBM streaming (f32-resident weights), large tile
  # (clamped to ceil(B/128)*128): loose check (input quantization only).
  res_def = grad_free_full_loss(xu, mu, x_next, params, lambda_0, lambda_1,
                                lambda_2)
  res_def = jax.block_until_ready(res_def)
  for got, want in zip(res_def, ref):
    assert jnp.allclose(got, want, rtol=2e-2, atol=2e-2), (got, want)

  print("KERNEL_OK")
</pallas_src>

<mosaic_0001>
module attributes {stable_mosaic.version = 11 : i64} {
  func.func @_grad_free_full_loss_kernel(%arg0: i32, %arg1: memref<20x128xf32, #tpu.memory_space<vmem>>, %arg2: memref<4x20xf32, #tpu.memory_space<vmem>>, %arg3: memref<20x8xf32, #tpu.memory_space<vmem>>, %arg4: memref<8x4xf32, #tpu.memory_space<vmem>>, %arg5: memref<4x1xf32, #tpu.memory_space<vmem>>, %arg6: memref<1x128xf32, #tpu.memory_space<vmem>>, %arg7: memref<1x128xf32, #tpu.memory_space<vmem>>) attributes {dimension_semantics = [#tpu.dimension_semantics<parallel>], iteration_bounds = array<i64: 3>, scalar_prefetch = 0 : i64, scratch_operands = 0 : i64, tpu.core_type = #tpu.core_type<tc>, window_params = [{transform_indices = @transform_0, window_bounds = array<i64: 20, 128>}, {pipeline_mode = #tpu.pipeline_mode<synchronous>, transform_indices = @transform_1, window_bounds = array<i64: 4, 20>}, {pipeline_mode = #tpu.pipeline_mode<synchronous>, transform_indices = @transform_2, window_bounds = array<i64: 20, 8>}, {pipeline_mode = #tpu.pipeline_mode<synchronous>, transform_indices = @transform_3, window_bounds = array<i64: 8, 4>}, {pipeline_mode = #tpu.pipeline_mode<synchronous>, transform_indices = @transform_4, window_bounds = array<i64: 4, 1>}, {transform_indices = @transform_5, window_bounds = array<i64: 1, 128>}, {transform_indices = @transform_6, window_bounds = array<i64: 1, 128>}]} {
    %c0 = arith.constant 0 : index
    %c0_0 = arith.constant 0 : index
    %0 = vector.load %arg1[%c0, %c0_0] : memref<20x128xf32, #tpu.memory_space<vmem>>, vector<20x128xf32>
    %1 = vector.extract_strided_slice %0 {offsets = [0, 0], sizes = [8, 128], strides = [1, 1]} : vector<20x128xf32> to vector<8x128xf32>
    %2 = vector.extract_strided_slice %0 {offsets = [8, 0], sizes = [12, 128], strides = [1, 1]} : vector<20x128xf32> to vector<12x128xf32>
    %c0_1 = arith.constant 0 : index
    %c0_2 = arith.constant 0 : index
    %3 = vector.load %arg2[%c0_1, %c0_2] : memref<4x20xf32, #tpu.memory_space<vmem>>, vector<4x20xf32>
    %cst = arith.constant dense<0.000000e+00> : vector<4x128xf32>
    %4 = tpu.matmul %3, %0, %cst {dimension_numbers = #tpu.dot_dimension_numbers<[1], [0], [0], [1], [0, 0, 1, 1], [], []>} : vector<4x20xf32>, vector<20x128xf32>, vector<4x128xf32> -> vector<4x128xf32>
    %5 = math.tanh %4 : vector<4x128xf32>
    %6 = arith.mulf %5, %5 : vector<4x128xf32>
    %7 = tpu.concatenate %5, %6 in 0 : vector<4x128xf32>, vector<4x128xf32> -> vector<8x128xf32>
    %c0_3 = arith.constant 0 : index
    %c0_4 = arith.constant 0 : index
    %8 = vector.load %arg3[%c0_3, %c0_4] : memref<20x8xf32, #tpu.memory_space<vmem>>, vector<20x8xf32>
    %cst_5 = arith.constant dense<0.000000e+00> : vector<20x128xf32>
    %9 = tpu.matmul %8, %7, %cst_5 {dimension_numbers = #tpu.dot_dimension_numbers<[1], [0], [0], [1], [0, 0, 1, 1], [], []>} : vector<20x8xf32>, vector<8x128xf32>, vector<20x128xf32> -> vector<20x128xf32>
    %10 = vector.extract_strided_slice %9 {offsets = [0, 0], sizes = [12, 128], strides = [1, 1]} : vector<20x128xf32> to vector<12x128xf32>
    %c0_6 = arith.constant 0 : index
    %c0_7 = arith.constant 0 : index
    %11 = vector.load %arg5[%c0_6, %c0_7] : memref<4x1xf32, #tpu.memory_space<vmem>>, vector<4x1xf32>
    %12 = vector.extract_strided_slice %9 {offsets = [16, 0], sizes = [4, 128], strides = [1, 1]} : vector<20x128xf32> to vector<4x128xf32>
    %13 = vector.broadcast %11 : vector<4x1xf32> to vector<4x128xf32>
    %14 = arith.addf %13, %12 : vector<4x128xf32>
    %c0_8 = arith.constant 0 : index
    %c0_9 = arith.constant 0 : index
    %15 = vector.load %arg4[%c0_8, %c0_9] : memref<8x4xf32, #tpu.memory_space<vmem>>, vector<8x4xf32>
    %cst_10 = arith.constant dense<0.000000e+00> : vector<8x128xf32>
    %16 = tpu.matmul %15, %14, %cst_10 {dimension_numbers = #tpu.dot_dimension_numbers<[1], [0], [0], [1], [0, 0, 1, 1], [], []>} : vector<8x4xf32>, vector<4x128xf32>, vector<8x128xf32> -> vector<8x128xf32>
    %17 = arith.subf %16, %1 : vector<8x128xf32>
    %18 = arith.subf %10, %2 : vector<12x128xf32>
    %c1_i32 = arith.constant 1 : i32
    %19 = arith.addi %arg0, %c1_i32 : i32
    %c128_i32 = arith.constant 128 : i32
    %20 = arith.muli %19, %c128_i32 : i32
    %c300_i32 = arith.constant 300 : i32
    %21 = arith.cmpi sle, %20, %c300_i32 : i32
    %22 = arith.extui %21 : i1 to i32
    %c0_i32 = arith.constant 0 : i32
    %23 = arith.cmpi ne, %22, %c0_i32 : i32
    scf.if %23 {
      %27 = arith.mulf %17, %17 : vector<8x128xf32>
      %28 = vector.shape_cast %27 : vector<8x128xf32> to vector<1x8x128xf32>
      %cst_13 = arith.constant dense<0.000000e+00> : vector<1xf32>
      %29 = vector.multi_reduction <add>, %28, %cst_13 [1, 2] : vector<1x8x128xf32> to vector<1xf32>
      %30 = vector.shape_cast %29 : vector<1xf32> to vector<1x1x1xf32>
      %31 = vector.extract %30[0, 0, 0] : f32 from vector<1x1x1xf32>
      %32 = vector.broadcast %31 : f32 to vector<1x1xf32>
      %33 = vector.shape_cast %32 : vector<1x1xf32> to vector<1x1xf32>
      %34 = vector.broadcast %33 : vector<1x1xf32> to vector<1x128xf32>
      %c0_14 = arith.constant 0 : index
      %c0_15 = arith.constant 0 : index
      %35 = vector.load %arg6[%c0_14, %c0_15] : memref<1x128xf32, #tpu.memory_space<vmem>>, vector<1x128xf32>
      tpu.vector_store %arg6[%c0_14, %c0_15], %34 {strides = array<i32>} : memref<1x128xf32, #tpu.memory_space<vmem>>, vector<1x128xf32>,
      %36 = arith.mulf %18, %18 : vector<12x128xf32>
      %37 = vector.shape_cast %36 : vector<12x128xf32> to vector<1x12x128xf32>
      %cst_16 = arith.constant dense<0.000000e+00> : vector<1xf32>
      %38 = vector.multi_reduction <add>, %37, %cst_16 [1, 2] : vector<1x12x128xf32> to vector<1xf32>
      %39 = vector.shape_cast %38 : vector<1xf32> to vector<1x1x1xf32>
      %40 = vector.extract %39[0, 0, 0] : f32 from vector<1x1x1xf32>
      %41 = vector.broadcast %40 : f32 to vector<1x1xf32>
      %42 = vector.shape_cast %41 : vector<1x1xf32> to vector<1x1xf32>
      %43 = vector.broadcast %42 : vector<1x1xf32> to vector<1x128xf32>
      %c0_17 = arith.constant 0 : index
      %c0_18 = arith.constant 0 : index
      %44 = vector.load %arg7[%c0_17, %c0_18] : memref<1x128xf32, #tpu.memory_space<vmem>>, vector<1x128xf32>
      tpu.vector_store %arg7[%c0_17, %c0_18], %43 {strides = array<i32>} : memref<1x128xf32, #tpu.memory_space<vmem>>, vector<1x128xf32>,
    } else {
    }
    %c300_i32_11 = arith.constant 300 : i32
    %24 = arith.cmpi sgt, %20, %c300_i32_11 : i32
    %25 = arith.extui %24 : i1 to i32
    %c0_i32_12 = arith.constant 0 : i32
    %26 = arith.cmpi ne, %25, %c0_i32_12 : i32
    scf.if %26 {
      %c128_i32_13 = arith.constant 128 : i32
      %27 = arith.muli %arg0, %c128_i32_13 : i32
      %28 = tpu.iota {dimensions = array<i32: 1>} : vector<1x128xi32>
      %29 = vector.broadcast %27 : i32 to vector<1x128xi32>
      %30 = arith.addi %29, %28 : vector<1x128xi32>
      %c300_i32_14 = arith.constant 300 : i32
      %31 = vector.broadcast %c300_i32_14 : i32 to vector<1x128xi32>
      %32 = arith.cmpi slt, %30, %31 : vector<1x128xi32>
      %cst_15 = arith.constant 0.000000e+00 : f32
      %33 = vector.shape_cast %32 : vector<1x128xi1> to vector<1x128xi1>
      %34 = vector.broadcast %33 : vector<1x128xi1> to vector<8x128xi1>
      %35 = vector.broadcast %cst_15 : f32 to vector<8x128xf32>
      %36 = arith.select %34, %17, %35 : vector<8x128xi1>, vector<8x128xf32>
      %cst_16 = arith.constant 0.000000e+00 : f32
      %37 = vector.shape_cast %32 : vector<1x128xi1> to vector<1x128xi1>
      %38 = vector.broadcast %37 : vector<1x128xi1> to vector<12x128xi1>
      %39 = vector.broadcast %cst_16 : f32 to vector<12x128xf32>
      %40 = arith.select %38, %18, %39 : vector<12x128xi1>, vector<12x128xf32>
      %41 = arith.mulf %36, %36 : vector<8x128xf32>
      %42 = vector.shape_cast %41 : vector<8x128xf32> to vector<1x8x128xf32>
      %cst_17 = arith.constant dense<0.000000e+00> : vector<1xf32>
      %43 = vector.multi_reduction <add>, %42, %cst_17 [1, 2] : vector<1x8x128xf32> to vector<1xf32>
      %44 = vector.shape_cast %43 : vector<1xf32> to vector<1x1x1xf32>
      %45 = vector.extract %44[0, 0, 0] : f32 from vector<1x1x1xf32>
      %46 = vector.broadcast %45 : f32 to vector<1x1xf32>
      %47 = vector.shape_cast %46 : vector<1x1xf32> to vector<1x1xf32>
      %48 = vector.broadcast %47 : vector<1x1xf32> to vector<1x128xf32>
      %c0_18 = arith.constant 0 : index
      %c0_19 = arith.constant 0 : index
      %49 = vector.load %arg6[%c0_18, %c0_19] : memref<1x128xf32, #tpu.memory_space<vmem>>, vector<1x128xf32>
      tpu.vector_store %arg6[%c0_18, %c0_19], %48 {strides = array<i32>} : memref<1x128xf32, #tpu.memory_space<vmem>>, vector<1x128xf32>,
      %50 = arith.mulf %40, %40 : vector<12x128xf32>
      %51 = vector.shape_cast %50 : vector<12x128xf32> to vector<1x12x128xf32>
      %cst_20 = arith.constant dense<0.000000e+00> : vector<1xf32>
      %52 = vector.multi_reduction <add>, %51, %cst_20 [1, 2] : vector<1x12x128xf32> to vector<1xf32>
      %53 = vector.shape_cast %52 : vector<1xf32> to vector<1x1x1xf32>
      %54 = vector.extract %53[0, 0, 0] : f32 from vector<1x1x1xf32>
      %55 = vector.broadcast %54 : f32 to vector<1x1xf32>
      %56 = vector.shape_cast %55 : vector<1x1xf32> to vector<1x1xf32>
      %57 = vector.broadcast %56 : vector<1x1xf32> to vector<1x128xf32>
      %c0_21 = arith.constant 0 : index
      %c0_22 = arith.constant 0 : index
      %58 = vector.load %arg7[%c0_21, %c0_22] : memref<1x128xf32, #tpu.memory_space<vmem>>, vector<1x128xf32>
      tpu.vector_store %arg7[%c0_21, %c0_22], %57 {strides = array<i32>} : memref<1x128xf32, #tpu.memory_space<vmem>>, vector<1x128xf32>,
    } else {
    }
    return
  }
  func.func @transform_0(%arg0: i32) -> (i32, i32) {
    %c0_i32 = arith.constant 0 : i32
    %c0_i32_0 = arith.constant 0 : i32
    return %c0_i32, %arg0 : i32, i32
  }
  func.func @transform_1(%arg0: i32) -> (i32, i32) {
    %c0_i32 = arith.constant 0 : i32
    %c0_i32_0 = arith.constant 0 : i32
    %c0_i32_1 = arith.constant 0 : i32
    return %c0_i32, %c0_i32_0 : i32, i32
  }
  func.func @transform_2(%arg0: i32) -> (i32, i32) {
    %c0_i32 = arith.constant 0 : i32
    %c0_i32_0 = arith.constant 0 : i32
    %c0_i32_1 = arith.constant 0 : i32
    return %c0_i32, %c0_i32_0 : i32, i32
  }
  func.func @transform_3(%arg0: i32) -> (i32, i32) {
    %c0_i32 = arith.constant 0 : i32
    %c0_i32_0 = arith.constant 0 : i32
    %c0_i32_1 = arith.constant 0 : i32
    return %c0_i32, %c0_i32_0 : i32, i32
  }
  func.func @transform_4(%arg0: i32) -> (i32, i32) {
    %c0_i32 = arith.constant 0 : i32
    %c0_i32_0 = arith.constant 0 : i32
    %c0_i32_1 = arith.constant 0 : i32
    return %c0_i32, %c0_i32_0 : i32, i32
  }
  func.func @transform_5(%arg0: i32) -> (i32, i32) {
    %c0_i32 = arith.constant 0 : i32
    %c0_i32_0 = arith.constant 0 : i32
    return %c0_i32, %arg0 : i32, i32
  }
  func.func @transform_6(%arg0: i32) -> (i32, i32) {
    %c0_i32 = arith.constant 0 : i32
    %c0_i32_0 = arith.constant 0 : i32
    return %c0_i32, %arg0 : i32, i32
  }
}

</mosaic_0001>

<llo_original>
// kernel: tpu_custom_call.1
$region0: #{tpu_custom_call.1}
  #allocation0 [shape = 'u32[]', space=smem, size = 0x4, offset = 0x4, fixed_abs, tag = 'smem constant byte address 0x4 - core index']
  #allocation1 [shape = 'u32[72,128]{1,0:T(1,128)}', space=vmem, size = 0x9000, scoped, tag = 'internal scratch']
  %s0 = inlined_call_operand.hbm [shape: f32[20,300], index: 0, kind: input, shape index: {}]
  %s1 = inlined_call_operand.vmem [shape: f32[4,20], index: 1, kind: input, shape index: {}]
  %s2 = inlined_call_operand.vmem [shape: f32[20,8], index: 2, kind: input, shape index: {}]
  %s3 = inlined_call_operand.vmem [shape: f32[8,4], index: 3, kind: input, shape index: {}]
  %s4 = inlined_call_operand.vmem [shape: f32[4,1], index: 4, kind: input, shape index: {}]
  %s5 = inlined_call_operand.hbm [shape: f32[1,384], index: 5, kind: output, shape index: {0}]
  %s6 = inlined_call_operand.hbm [shape: f32[1,384], index: 6, kind: output, shape index: {1}]
  %7 = xla_tuple %s5, %s6
  %s8 = sld [smem:[#allocation0]]
  $region73: #{tpu_custom_call.1} parent=0
    _
  %s10 = ssub.s32 1, %s8
  %s11 = scalar_select 0, %s10, %s8
  $region1: #{tpu_custom_call.1} parent=0
    #allocation2 [shape = 'u8[24576]{0}', space=vmem, size = 0x6000, scoped, tag = 'input window, operand 0']
    #allocation3 [shape = 's32[2]{0}', space=sflag, size = 0x8, scoped, tag = 'scoped memory for tpu_custom_call.1']
    #allocation4 [shape = 's32[2]{0}', space=sflag, size = 0x8, scoped, tag = 'scoped memory for tpu_custom_call.1']
    #allocation5 [shape = 'u8[1024]{0}', space=vmem, size = 0x400, scoped, tag = 'output window, operand 0']
    #allocation6 [shape = 'u8[1024]{0}', space=vmem, size = 0x400, scoped, tag = 'output window, operand 1']
    #allocation7 [shape = 's32[2]{0}', space=sflag, size = 0x8, scoped, tag = 'scoped memory for tpu_custom_call.1']
    %12 = vsyncpa [#allocation3], 0
    %s13 = scalar_lea.sflag [#allocation3], 1
    %14 = vsyncpa %s13, 0
    %15 = vsyncpa [#allocation4], 0
    %s16 = scalar_lea.sflag [#allocation4], 1
    %17 = vsyncpa %s16, 0
    %18 = vsyncpa [#allocation7], 0
    %s19 = scalar_lea.sflag [#allocation7], 1
    %20 = vsyncpa %s19, 0
    loop: start=0, step=1, limit=5
    $region2: #{tpu_custom_call.1} parent=1 // loop_pre_header
      _
    $region3: #{tpu_custom_call.1} parent=1 // loop_header
      %s22 = sphi 0, %s26
      %p23 = scmp.ge.s32.totalorder %s22, 5
      %s32 = sphi 0, %s34
      %s35 = sphi 0, %s32
      %s36 = sphi 0, %s35
      %s52 = sphi 0, %s36
      %s56 = sphi 0, %s56
      %s58 = sphi 0, %s56
      %s59 = sphi 0, %s58
      %s73 = sphi 0, %s59
      %s77 = sphi 0, %s77
      %s79 = sphi 0, %s77
      %s80 = sphi 0, %s79
      %s94 = sphi 0, %s80
      %s98 = sphi 0, %s98
      %s100 = sphi 0, %s98
      %s101 = sphi 0, %s100
      %s115 = sphi 0, %s101
      %s119 = sphi 0, %s119
      %s121 = sphi 0, %s119
      %s122 = sphi 0, %s121
      %s136 = sphi 0, %s122
      %s142 = sphi 0, %s144
      %s145 = sphi 0, %s142
      %s146 = sphi 0, %s145
      %s162 = sphi 0, %s146
      %s168 = sphi 0, %s170
      %s171 = sphi 0, %s168
      %s172 = sphi 0, %s171
      %s188 = sphi 0, %s172
    $region4: #{tpu_custom_call.1} parent=1 // loop_header_branch
      %25 = sbr.rel (%p23) target = $region8
    $region5: #{tpu_custom_call.1} parent=1 // loop_body
      %s27 = ssub.s32 %s22, 1
      %s28 = ssub.s32 %s22, 2
      %s29 = sadd.s32 %s22, 1
      %s30 = ssub.s32 %s22, %s29
      %p31 = scmp.eq.s32.totalorder %s30, 0
      %s33 = sadd.s32 %s32, 1
      %s34 = scalar_select %p31, %s32, %s33
      %p37 = pneg %p31
      %p38 = scmp.eq.s32.totalorder %s22, 2
      %p39 = por %p37, %p38
      %p40 = scmp.ne.s32.totalorder %s32, %s35
      %p41 = scmp.eq.s32.totalorder %s22, 0
      %p42 = por %p40, %p41
      %p43 = scmp.ne.s32.totalorder %s32, %s35
      %p44 = scmp.eq.s32.totalorder %s27, 2
      %p45 = por %p43, %p44
      %p46 = scmp.ne.s32.totalorder %s35, %s36
      %p47 = scmp.eq.s32.totalorder %s27, 0
      %p48 = por %p46, %p47
      %p49 = scmp.ne.s32.totalorder %s35, %s36
      %p50 = scmp.eq.s32.totalorder %s28, 2
      %p51 = por %p49, %p50
      %p53 = scmp.ne.s32.totalorder %s36, %s52
      %p54 = scmp.eq.s32.totalorder %s28, 0
      %p55 = por %p53, %p54
      %s57 = sadd.s32 %s56, 1
      %p60 = scmp.eq.s32.totalorder %s22, 2
      %p61 = scmp.ne.s32.totalorder %s56, %s58
      %p62 = scmp.eq.s32.totalorder %s22, 0
      %p63 = por %p61, %p62
      %p64 = scmp.ne.s32.totalorder %s56, %s58
      %p65 = scmp.eq.s32.totalorder %s27, 2
      %p66 = por %p64, %p65
      %p67 = scmp.ne.s32.totalorder %s58, %s59
      %p68 = scmp.eq.s32.totalorder %s27, 0
      %p69 = por %p67, %p68
      %p70 = scmp.ne.s32.totalorder %s58, %s59
      %p71 = scmp.eq.s32.totalorder %s28, 2
      %p72 = por %p70, %p71
      %p74 = scmp.ne.s32.totalorder %s59, %s73
      %p75 = scmp.eq.s32.totalorder %s28, 0
      %p76 = por %p74, %p75
      %s78 = sadd.s32 %s77, 1
      %p81 = scmp.eq.s32.totalorder %s22, 2
      %p82 = scmp.ne.s32.totalorder %s77, %s79
      %p83 = scmp.eq.s32.totalorder %s22, 0
      %p84 = por %p82, %p83
      %p85 = scmp.ne.s32.totalorder %s77, %s79
      %p86 = scmp.eq.s32.totalorder %s27, 2
      %p87 = por %p85, %p86
      %p88 = scmp.ne.s32.totalorder %s79, %s80
      %p89 = scmp.eq.s32.totalorder %s27, 0
      %p90 = por %p88, %p89
      %p91 = scmp.ne.s32.totalorder %s79, %s80
      %p92 = scmp.eq.s32.totalorder %s28, 2
      %p93 = por %p91, %p92
      %p95 = scmp.ne.s32.totalorder %s80, %s94
      %p96 = scmp.eq.s32.totalorder %s28, 0
      %p97 = por %p95, %p96
      %s99 = sadd.s32 %s98, 1
      %p102 = scmp.eq.s32.totalorder %s22, 2
      %p103 = scmp.ne.s32.totalorder %s98, %s100
      %p104 = scmp.eq.s32.totalorder %s22, 0
      %p105 = por %p103, %p104
      %p106 = scmp.ne.s32.totalorder %s98, %s100
      %p107 = scmp.eq.s32.totalorder %s27, 2
      %p108 = por %p106, %p107
      %p109 = scmp.ne.s32.totalorder %s100, %s101
      %p110 = scmp.eq.s32.totalorder %s27, 0
      %p111 = por %p109, %p110
      %p112 = scmp.ne.s32.totalorder %s100, %s101
      %p113 = scmp.eq.s32.totalorder %s28, 2
      %p114 = por %p112, %p113
      %p116 = scmp.ne.s32.totalorder %s101, %s115
      %p117 = scmp.eq.s32.totalorder %s28, 0
      %p118 = por %p116, %p117
      %s120 = sadd.s32 %s119, 1
      %p123 = scmp.eq.s32.totalorder %s22, 2
      %p124 = scmp.ne.s32.totalorder %s119, %s121
      %p125 = scmp.eq.s32.totalorder %s22, 0
      %p126 = por %p124, %p125
      %p127 = scmp.ne.s32.totalorder %s119, %s121
      %p128 = scmp.eq.s32.totalorder %s27, 2
      %p129 = por %p127, %p128
      %p130 = scmp.ne.s32.totalorder %s121, %s122
      %p131 = scmp.eq.s32.totalorder %s27, 0
      %p132 = por %p130, %p131
      %p133 = scmp.ne.s32.totalorder %s121, %s122
      %p134 = scmp.eq.s32.totalorder %s28, 2
      %p135 = por %p133, %p134
      %p137 = scmp.ne.s32.totalorder %s122, %s136
      %p138 = scmp.eq.s32.totalorder %s28, 0
      %p139 = por %p137, %p138
      %s140 = ssub.s32 %s22, %s29
      %p141 = scmp.eq.s32.totalorder %s140, 0
      %s143 = sadd.s32 %s142, 1
      %s144 = scalar_select %p141, %s142, %s143
      %p147 = pneg %p141
      %p148 = scmp.eq.s32.totalorder %s22, 2
      %p149 = por %p147, %p148
      %p150 = scmp.ne.s32.totalorder %s142, %s145
      %p151 = scmp.eq.s32.totalorder %s22, 0
      %p152 = por %p150, %p151
      %p153 = scmp.ne.s32.totalorder %s142, %s145
      %p154 = scmp.eq.s32.totalorder %s27, 2
      %p155 = por %p153, %p154
      %p156 = scmp.ne.s32.totalorder %s145, %s146
      %p157 = scmp.eq.s32.totalorder %s27, 0
      %p158 = por %p156, %p157
      %p159 = scmp.ne.s32.totalorder %s145, %s146
      %p160 = scmp.eq.s32.totalorder %s28, 2
      %p161 = por %p159, %p160
      %p163 = scmp.ne.s32.totalorder %s146, %s162
      %p164 = scmp.eq.s32.totalorder %s28, 0
      %p165 = por %p163, %p164
      %s166 = ssub.s32 %s22, %s29
      %p167 = scmp.eq.s32.totalorder %s166, 0
      %s169 = sadd.s32 %s168, 1
      %s170 = scalar_select %p167, %s168, %s169
      %p173 = pneg %p167
      %p174 = scmp.eq.s32.totalorder %s22, 2
      %p175 = por %p173, %p174
      %p176 = scmp.ne.s32.totalorder %s168, %s171
      %p177 = scmp.eq.s32.totalorder %s22, 0
      %p178 = por %p176, %p177
      %p179 = scmp.ne.s32.totalorder %s168, %s171
      %p180 = scmp.eq.s32.totalorder %s27, 2
      %p181 = por %p179, %p180
      %p182 = scmp.ne.s32.totalorder %s171, %s172
      %p183 = scmp.eq.s32.totalorder %s27, 0
      %p184 = por %p182, %p183
      %p185 = scmp.ne.s32.totalorder %s171, %s172
      %p186 = scmp.eq.s32.totalorder %s28, 2
      %p187 = por %p185, %p186
      %p189 = scmp.ne.s32.totalorder %s172, %s188
      %p190 = scmp.eq.s32.totalorder %s28, 0
      %p191 = por %p189, %p190
      %p192 = scmp.le.s32.totalorder 1, %s22
      %p193 = scmp.lt.s32.totalorder %s22, 4
      %p194 = pnand %p192, %p193
      %p195 = pneg %p194
      // Predicated region
      $region9: #{tpu_custom_call.1} parent=5 // pred_check
        _
      $region10: #{tpu_custom_call.1} parent=5 // pred_check_branch
        %197 = sbr.rel (%p194) target = $region12
      $region11: #{tpu_custom_call.1} parent=5 // pred_region
        %s198 = ssub.s32 %s22, 1
        // Predicated region
        $region13: #{tpu_custom_call.1} parent=11 // pred_check
          %p199 = pneg %p69
        $region14: #{tpu_custom_call.1} parent=11 // pred_check_branch
          %201 = sbr.rel (%p199) target = $region16
        $region15: #{tpu_custom_call.1} parent=11 // pred_region
          _
        $region16: #{tpu_custom_call.1} parent=11 // pred_fallthru
          _
        // Predicated region
        $region17: #{tpu_custom_call.1} parent=11 // pred_check
          %p202 = pneg %p90
        $region18: #{tpu_custom_call.1} parent=11 // pred_check_branch
          %204 = sbr.rel (%p202) target = $region20
        $region19: #{tpu_custom_call.1} parent=11 // pred_region
          _
        $region20: #{tpu_custom_call.1} parent=11 // pred_fallthru
          _
        // Predicated region
        $region21: #{tpu_custom_call.1} parent=11 // pred_check
          %p205 = pneg %p111
        $region22: #{tpu_custom_call.1} parent=11 // pred_check_branch
          %207 = sbr.rel (%p205) target = $region24
        $region23: #{tpu_custom_call.1} parent=11 // pred_region
          _
        $region24: #{tpu_custom_call.1} parent=11 // pred_fallthru
          _
        // Predicated region
        $region25: #{tpu_custom_call.1} parent=11 // pred_check
          %p208 = pneg %p132
        $region26: #{tpu_custom_call.1} parent=11 // pred_check_branch
          %210 = sbr.rel (%p208) target = $region28
        $region27: #{tpu_custom_call.1} parent=11 // pred_region
          _
        $region28: #{tpu_custom_call.1} parent=11 // pred_fallthru
          _
      $region12: #{tpu_custom_call.1} parent=5 // pred_fallthru
        _
      %p211 = scmp.lt.s32.totalorder %s22, 3
      // Predicated region
      $region29: #{tpu_custom_call.1} parent=5 // pred_check
        %p212 = pneg %p211
      $region30: #{tpu_custom_call.1} parent=5 // pred_check_branch
        %214 = sbr.rel (%p212) target = $region32
      $region31: #{tpu_custom_call.1} parent=5 // pred_region
        // Predicated region
        $region33: #{tpu_custom_call.1} parent=31 // pred_check
          %p215 = pneg %p42
        $region34: #{tpu_custom_call.1} parent=31 // pred_check_branch
          %217 = sbr.rel (%p215) target = $region36
        $region35: #{tpu_custom_call.1} parent=31 // pred_region
          %s218 = sand.u32 %s32, 1
          %s219 = scalar_lea.sflag [#allocation3], %s218
          %s220 = sand.u32 %s32, 1
          %s221 = smul.addr %s220, 24
          %s222 = scalar_lea.vmem [#allocation2], %s221
          %224 = vsyncadd %s219, 0
          %s225 = smul.addr %s22, 8
          %s226 = scalar_lea.hbm %s0, %s225
          %s227 = sshll.u32 %s226, 4
          %s228 = int_to_ptr.hbm [resolvable:$true] %s227
          %s229 = sshll.u32 %s222, 4
          %s230 = int_to_ptr.vmem [resolvable:$true] %s229
          %235 = dma.hbm_to_vmem [thread:$0]  %s228, 384, %s230, %s219, 384, 128, 8
        $region36: #{tpu_custom_call.1} parent=31 // pred_fallthru
          _
      $region32: #{tpu_custom_call.1} parent=5 // pred_fallthru
        _
      %p236 = scmp.le.s32.totalorder 1, %s22
      %p237 = scmp.lt.s32.totalorder %s22, 4
      %p238 = pnand %p236, %p237
      %p239 = pneg %p238
      // Predicated region
      $region37: #{tpu_custom_call.1} parent=5 // pred_check
        _
      $region38: #{tpu_custom_call.1} parent=5 // pred_check_branch
        %241 = sbr.rel (%p238) target = $region40
      $region39: #{tpu_custom_call.1} parent=5 // pred_region
        %s242 = ssub.s32 %s22, 1
        %s243 = sand.u32 %s35, 1
        %s244 = scalar_lea.sflag [#allocation3], %s243
        %s245 = sand.u32 %s35, 1
        %s246 = smul.addr %s245, 24
        %s247 = scalar_lea.vmem [#allocation2], %s246
        // Predicated region
        $region41: #{tpu_custom_call.1} parent=39 // pred_check
          %p248 = pneg %p48
        $region42: #{tpu_custom_call.1} parent=39 // pred_check_branch
          %250 = sbr.rel (%p248) target = $region44
        $region43: #{tpu_custom_call.1} parent=39 // pred_region
          %252 = dma.done %s244, 384
        $region44: #{tpu_custom_call.1} parent=39 // pred_fallthru
          _
        %s253 = sand.u32 %s35, 1
        %s254 = scalar_lea.sflag [#allocation3], %s253
        %s255 = sand.u32 %s35, 1
        %s256 = smul.addr %s255, 24
        %s257 = scalar_lea.vmem [#allocation2], %s256
        %p258 = pneg %p48
        %p259 = pneg %p45
        %p260 = pneg %p69
        %p261 = pneg %p66
        %p262 = pneg %p90
        %p263 = pneg %p87
        %p264 = pneg %p111
        %p265 = pneg %p108
        %p266 = pneg %p132
        %p267 = pneg %p129
        %p268 = pneg %p158
        %p269 = pneg %p155
        %s270 = sand.u32 %s145, 1
        %s271 = scalar_lea.sflag [#allocation4], %s270
        %s272 = sand.u32 %s145, 1
        %s273 = scalar_lea.vmem [#allocation5], %s272
        %p274 = pneg %p184
        %p275 = pneg %p181
        %s276 = sand.u32 %s171, 1
        %s277 = scalar_lea.sflag [#allocation7], %s276
        %s278 = sand.u32 %s171, 1
        %s279 = scalar_lea.vmem [#allocation6], %s278
        %v280 = vld [vmem:[%s247] sm:$0xff]
        %v281 = vld [vmem:[%s247 + $0x8] sm:$0xff]
        %v282 = vld [vmem:[%s247 + $0x10] sm:$0xf]
        %v283 = vld [vmem:[%s1] sm:$0xf]
        %vm284 = vcmask 162816
        %v286 = vsel %vm284, %v283, 0
        %vm288 = vcmask 1043456
        %v290 = vsel %vm288, %v282, 0
        %292 = vmatpush.msra.mxu0 0.0
        %293 = vmatpush.msra.mxu0 0.0
        %294 = vmatpush.msra.mxu0 0.0
        %295 = vmatpush.msra.mxu0 0.0
        %296 = vmatpush.msra.mxu0 0.0
        %297 = vmatpush.msra.mxu0 0.0
        %298 = vmatpush.msra.mxu0 0.0
        %299 = vmatpush.msra.mxu0 0.0
        %300 = vmatpush.msra.mxu0 0.0
        %301 = vmatpush.msra.mxu0 0.0
        %302 = vmatpush.msra.mxu0 0.0
        %303 = vmatpush.msra.mxu0 0.0
        %304 = vmatpush.msra.mxu0 0.0
        %305 = vmatpush.msra.mxu0 %v290
        %306 = vmatpush.msra.mxu0 %v281
        %307 = vmatpush.msra.mxu0 %v280
        %308 = vmatmul.f32.gmra.mxu0 %v286
        %v309 = vpop.f32.mrf.mxu0
        %v310 = vadd.f32 0.0, %v309
        %311 = vdwg.mxu0
        %v312 = vtanh.pop %v310
        %v313 = vmul.f32 %v312, %v312
        %v315 = vrot.slane %v313, 4
        %v317 = vsel %vm288, %v312, %v315
        %v318 = vld [vmem:[%s2] sm:$0xff]
        %v319 = vld [vmem:[%s2 + $0x8] sm:$0xff]
        %v320 = vld [vmem:[%s2 + $0x10] sm:$0xf]
        %vm321 = vcmask 64512
        %v323 = vsel %vm321, %v318, 0
        %v326 = vsel %vm321, %v319, 0
        %v329 = vsel %vm321, %v320, 0
        %331 = vmatpush.msra.mxu0 0.0
        %332 = vmatpush.msra.mxu0 0.0
        %333 = vmatpush.msra.mxu0 0.0
        %334 = vmatpush.msra.mxu0 0.0
        %335 = vmatpush.msra.mxu0 0.0
        %336 = vmatpush.msra.mxu0 0.0
        %337 = vmatpush.msra.mxu0 0.0
        %338 = vmatpush.msra.mxu0 0.0
        %339 = vmatpush.msra.mxu0 0.0
        %340 = vmatpush.msra.mxu0 0.0
        %341 = vmatpush.msra.mxu0 0.0
        %342 = vmatpush.msra.mxu0 0.0
        %343 = vmatpush.msra.mxu0 0.0
        %344 = vmatpush.msra.mxu0 0.0
        %345 = vmatpush.msra.mxu0 0.0
        %346 = vmatpush.msra.mxu0 %v317
        %347 = vmatmul.f32.gmra.mxu0 %v323
        %v348 = vpop.f32.mrf.mxu0
        %v349 = vadd.f32 0.0, %v348
        %350 = vmatmul.f32.gmra.mxu0 %v326
        %v351 = vpop.f32.mrf.mxu0
        %v352 = vadd.f32 0.0, %v351
        %353 = vmatmul.f32.gmra.mxu0 %v329
        %v354 = vpop.f32.mrf.mxu0
        %v355 = vadd.f32 0.0, %v354
        %356 = vdwg.mxu0
        %v357 = vld [vmem:[%s4] sm:$0xf]
        %359 = vset.pattern.permute.xlu0 0
        %360 = vperm.xlu0 %359, %v357
        %v361 = vpop.permute.xlu0 %360
        %v363 = vadd.f32 %v361, %v355
        %v364 = vld [vmem:[%s3] sm:$0xff]
        %vm365 = vcmask 31744
        %v367 = vsel %vm365, %v364, 0
        %v370 = vsel %vm288, %v363, 0
        %372 = vmatpush.msra.mxu0 0.0
        %373 = vmatpush.msra.mxu0 0.0
        %374 = vmatpush.msra.mxu0 0.0
        %375 = vmatpush.msra.mxu0 0.0
        %376 = vmatpush.msra.mxu0 0.0
        %377 = vmatpush.msra.mxu0 0.0
        %378 = vmatpush.msra.mxu0 0.0
        %379 = vmatpush.msra.mxu0 0.0
        %380 = vmatpush.msra.mxu0 0.0
        %381 = vmatpush.msra.mxu0 0.0
        %382 = vmatpush.msra.mxu0 0.0
        %383 = vmatpush.msra.mxu0 0.0
        %384 = vmatpush.msra.mxu0 0.0
        %385 = vmatpush.msra.mxu0 0.0
        %386 = vmatpush.msra.mxu0 0.0
        %387 = vmatpush.msra.mxu0 %v370
        %388 = vmatmul.f32.gmra.mxu0 %v367
        %v389 = vpop.f32.mrf.mxu0
        %v390 = vadd.f32 0.0, %v389
        %391 = vdwg.mxu0
        %v392 = vsub.f32 %v390, %v280
        %v393 = vsub.f32 %v349, %v281
        %v394 = vsub.f32 %v352, %v282
        %s395 = sadd.s32 %s27, 1
        %s396 = smul.u32 %s395, 128
        %p397 = scmp.le.s32.totalorder %s396, 300
        // Predicated region
        $region45: #{tpu_custom_call.1} parent=39 // pred_check
          %p398 = pneg %p397
        $region46: #{tpu_custom_call.1} parent=39 // pred_check_branch
          %400 = sbr.rel (%p398) target = $region48
        $region47: #{tpu_custom_call.1} parent=39 // pred_region
          %v401 = vmul.f32 %v392, %v392
          %402 = vadd.xlane.f32.xlu0 %v401
          %v403 = vpop.xlane.xlu0 %402
          %v404 = vrot.slane %v403, 4
          %v405 = vadd.f32 %v403, %v404
          %v406 = vrot.slane %v405, 2
          %v407 = vadd.f32 %v405, %v406
          %v408 = vrot.slane %v407, 1
          %v409 = vadd.f32 %v407, %v408
          %s410 = vtos %v409
          %v411 = vstv %s410
          %412 = vst [vmem:[%s273] sm:$0x1] %v411
          %v413 = vmul.f32 %v393, %v393
          %v414 = vmul.f32 %v394, %v394
          %v415 = vsel %vm288, %v414, 0.0
          %v416 = vadd.f32 %v413, %v415
          %417 = vadd.xlane.f32.xlu0 %v416
          %v418 = vpop.xlane.xlu0 %417
          %v419 = vrot.slane %v418, 4
          %v420 = vadd.f32 %v418, %v419
          %v421 = vrot.slane %v420, 2
          %v422 = vadd.f32 %v420, %v421
          %v423 = vrot.slane %v422, 1
          %v424 = vadd.f32 %v422, %v423
          %s425 = vtos %v424
          %v426 = vstv %s425
          %427 = vst [vmem:[%s279] sm:$0x1] %v426
        $region48: #{tpu_custom_call.1} parent=39 // pred_fallthru
          _
        %p428 = scmp.gt.s32.totalorder %s396, 300
        // Predicated region
        $region49: #{tpu_custom_call.1} parent=39 // pred_check
          %p429 = pneg %p428
        $region50: #{tpu_custom_call.1} parent=39 // pred_check_branch
          %431 = sbr.rel (%p429) target = $region52
        $region51: #{tpu_custom_call.1} parent=39 // pred_region
          %s432 = smul.u32 %s27, 128
          %v433 = vlaneseq
          %v434 = vand.u32 %v433, 127
          %v435 = vstv %s432
          %v436 = vadd.s32 %v435, %v434
          %vm437 = vcmp.lt.s32.totalorder %v436, 300
          %v438 = vsel %vm437, 1, 0
          %vm439 = vcmp.eq.s32.totalorder %v438, 1
          %v440 = vsel %vm439, %v392, 0.0
          %v441 = vsel %vm439, %v393, 0.0
          %v442 = vsel %vm439, %v394, 0.0
          %v443 = vmul.f32 %v440, %v440
          %444 = vadd.xlane.f32.xlu0 %v443
          %v445 = vpop.xlane.xlu0 %444
          %v446 = vrot.slane %v445, 4
          %v447 = vadd.f32 %v445, %v446
          %v448 = vrot.slane %v447, 2
          %v449 = vadd.f32 %v447, %v448
          %v450 = vrot.slane %v449, 1
          %v451 = vadd.f32 %v449, %v450
          %s452 = vtos %v451
          %v453 = vstv %s452
          %454 = vst [vmem:[%s273] sm:$0x1] %v453
          %v455 = vmul.f32 %v441, %v441
          %v456 = vmul.f32 %v442, %v442
          %v457 = vsel %vm288, %v456, 0.0
          %v458 = vadd.f32 %v455, %v457
          %459 = vadd.xlane.f32.xlu0 %v458
          %v460 = vpop.xlane.xlu0 %459
          %v461 = vrot.slane %v460, 4
          %v462 = vadd.f32 %v460, %v461
          %v463 = vrot.slane %v462, 2
          %v464 = vadd.f32 %v462, %v463
          %v465 = vrot.slane %v464, 1
          %v466 = vadd.f32 %v464, %v465
          %s467 = vtos %v466
          %v468 = vstv %s467
          %469 = vst [vmem:[%s279] sm:$0x1] %v468
        $region52: #{tpu_custom_call.1} parent=39 // pred_fallthru
          _
        %s470 = sand.u32 %s145, 1
        %s471 = scalar_lea.sflag [#allocation4], %s470
        %s472 = sand.u32 %s145, 1
        %s473 = scalar_lea.vmem [#allocation5], %s472
        %s474 = sand.u32 %s171, 1
        %s475 = scalar_lea.sflag [#allocation7], %s474
        %s476 = sand.u32 %s171, 1
        %s477 = scalar_lea.vmem [#allocation6], %s476
        // Predicated region
        $region53: #{tpu_custom_call.1} parent=39 // pred_check
          %p478 = pneg %p155
        $region54: #{tpu_custom_call.1} parent=39 // pred_check_branch
          %480 = sbr.rel (%p478) target = $region56
        $region55: #{tpu_custom_call.1} parent=39 // pred_region
          %482 = vsyncadd %s471, 0
          %s483 = scalar_lea.hbm %s5, %s27
          %s485 = sshll.u32 %s473, 4
          %s486 = int_to_ptr.vmem [resolvable:$true] %s485
          %s487 = sshll.u32 %s483, 4
          %s488 = int_to_ptr.hbm [resolvable:$true] %s487
          %490 = dma.vmem_to_hbm [thread:$0]  %s486, 16, %s488, %s471
        $region56: #{tpu_custom_call.1} parent=39 // pred_fallthru
          _
        // Predicated region
        $region57: #{tpu_custom_call.1} parent=39 // pred_check
          %p491 = pneg %p181
        $region58: #{tpu_custom_call.1} parent=39 // pred_check_branch
          %493 = sbr.rel (%p491) target = $region60
        $region59: #{tpu_custom_call.1} parent=39 // pred_region
          %495 = vsyncadd %s475, 0
          %s496 = scalar_lea.hbm %s6, %s27
          %s498 = sshll.u32 %s477, 4
          %s499 = int_to_ptr.vmem [resolvable:$true] %s498
          %s500 = sshll.u32 %s496, 4
          %s501 = int_to_ptr.hbm [resolvable:$true] %s500
          %503 = dma.vmem_to_hbm [thread:$0]  %s499, 16, %s501, %s475
        $region60: #{tpu_custom_call.1} parent=39 // pred_fallthru
          _
      $region40: #{tpu_custom_call.1} parent=5 // pred_fallthru
        _
      %p504 = scmp.le.s32.totalorder 2, %s22
      // Predicated region
      $region61: #{tpu_custom_call.1} parent=5 // pred_check
        %p505 = pneg %p504
      $region62: #{tpu_custom_call.1} parent=5 // pred_check_branch
        %507 = sbr.rel (%p505) target = $region64
      $region63: #{tpu_custom_call.1} parent=5 // pred_region
        %s508 = ssub.s32 %s22, 2
        // Predicated region
        $region65: #{tpu_custom_call.1} parent=63 // pred_check
          %p509 = pneg %p161
        $region66: #{tpu_custom_call.1} parent=63 // pred_check_branch
          %511 = sbr.rel (%p509) target = $region68
        $region67: #{tpu_custom_call.1} parent=63 // pred_region
          %s512 = sand.u32 %s146, 1
          %s513 = scalar_lea.sflag [#allocation4], %s512
          %s514 = sand.u32 %s146, 1
          %s515 = scalar_lea.vmem [#allocation5], %s514
          %517 = dma.done %s513, 16
        $region68: #{tpu_custom_call.1} parent=63 // pred_fallthru
          _
        // Predicated region
        $region69: #{tpu_custom_call.1} parent=63 // pred_check
          %p518 = pneg %p187
        $region70: #{tpu_custom_call.1} parent=63 // pred_check_branch
          %520 = sbr.rel (%p518) target = $region72
        $region71: #{tpu_custom_call.1} parent=63 // pred_region
          %s521 = sand.u32 %s172, 1
          %s522 = scalar_lea.sflag [#allocation7], %s521
          %s523 = sand.u32 %s172, 1
          %s524 = scalar_lea.vmem [#allocation6], %s523
          %526 = dma.done %s522, 16
        $region72: #{tpu_custom_call.1} parent=63 // pred_fallthru
          _
      $region64: #{tpu_custom_call.1} parent=5 // pred_fallthru
        _
    $region6: #{tpu_custom_call.1} parent=1 // loop_footer
      %s26 = sadd.s32 1, %s22
    $region7: #{tpu_custom_call.1} parent=1 // loop_footer_branch
      %21 = sbr.rel target = $region3
    $region8: #{tpu_custom_call.1} parent=1 // loop_exit
      _
    %527 = vsyncpa [#allocation3], 1
    %s528 = scalar_lea.sflag [#allocation3], 1
    %529 = vsyncpa %s528, 1
    %530 = vsyncpa [#allocation4], 1
    %s531 = scalar_lea.sflag [#allocation4], 1
    %532 = vsyncpa %s531, 1
    %533 = vsyncpa [#allocation7], 1
    %s534 = scalar_lea.sflag [#allocation7], 1
    %535 = vsyncpa %s534, 1

</llo_original>
